<compile_context>
chip_gen: v6e
topology: v6e:2x2x1
jax: 0.10.0
libtpu: 0.0.40
codegen_flags: <defaults>
</compile_context>

<pallas_src>
import functools

import jax
import jax.numpy as jnp
from jax import lax
from jax.experimental import pallas as pl
from jax.experimental.pallas import tpu as pltpu

ALPHA = 10000.0
EPSILON = 0.001


def _ib_loss_kernel(logits_ref, target_ref, feats_ref, out_ref, *, n_total, block_n):
    i = pl.program_id(0)

    logits = logits_ref[...].astype(jnp.float32)     # (bn, C)
    target = target_ref[...]                         # (bn, 1) int32
    feats = feats_ref[...].astype(jnp.float32)       # (bn, F)
    bn, c = logits.shape

    # --- target logit gathered from the RAW logits (no one-hot, independent
    #     of the max/subtract chain so VPU select + XLU reduce overlap it) ---
    class_ids = lax.broadcasted_iota(jnp.int32, (bn, c), 1)       # (bn, C)
    logit_t = jnp.sum(jnp.where(class_ids == target, logits, 0.0),
                      axis=1, keepdims=True)                      # (bn, 1)

    # --- numerically stable log-sum-exp -------------------------------------
    row_max = jnp.max(logits, axis=1, keepdims=True)              # (bn, 1)
    shifted = logits - row_max                                    # (bn, C)
    # TODO(synk): optional bf16 exp on v6e/v7x if EUP becomes the bottleneck.
    sum_exp = jnp.sum(jnp.exp(shifted), axis=1, keepdims=True)    # (bn, 1)
    log_sum_exp = jnp.log(sum_exp)                                # (bn, 1)

    # --- per-sample cross entropy (weight=None) ------------------------------
    # TODO(synk): per-class `weight` (default None in the module) not plumbed in.
    ce = (row_max + log_sum_exp) - logit_t                        # (bn, 1)

    # --- grads = sum_c |softmax - one_hot| == 2 * (1 - p_target) -------------
    grads = 2.0 * (1.0 - jnp.exp(-ce))                            # (bn, 1)

    # --- feature magnitude ----------------------------------------------------
    feat_sum = jnp.sum(jnp.abs(feats), axis=1, keepdims=True)     # (bn, 1)

    # --- ib weight: exact divide (tiny vector; approx reciprocal error would
    #     be amplified by ALPHA / near-EPSILON denominators) -------------------
    ib = ALPHA / (grads * feat_sum + EPSILON)                     # (bn, 1)

    # --- masked partial sum (padded rows of the ragged last tile -> 0) --------
    row_ids = i * block_n + lax.broadcasted_iota(jnp.int32, (bn, 1), 0)
    contrib = jnp.where(row_ids < n_total, ce * ib, 0.0)
    partial = jnp.sum(contrib)

    # Lane-dense, unmasked full-vreg store of the per-tile partial sum.
    out_ref[...] = jnp.full((1, 8, 128), partial, dtype=jnp.float32)


def _round_down(x, m):
    return (x // m) * m


def _round_up(x, m):
    return -(-x // m) * m


def _vmem_capacity_bytes():
    # Per-generation VMEM: 128 MiB on v5e/v6e, 64 MiB per TC on v7x.
    try:
        return int(pltpu.get_tpu_info().vmem_capacity_bytes)
    except Exception:
        return 64 * 1024 * 1024  # conservative (v7x) fallback


def _choose_block_n(n, c, f, logit_isz, feat_isz):
    """Returns (block_n, vmem_limit_bytes)."""
    vmem = _vmem_capacity_bytes()
    # 96 MiB scoped limit on the 128 MiB parts, 48 MiB on the 64 MiB part.
    vmem_limit = min(96 * 1024 * 1024, (vmem * 3) // 4)
    budget = max(vmem_limit - 8 * 1024 * 1024, 8 * 1024 * 1024)

    # Sublane packing of the streamed inputs: f32 -> 8 rows, bf16 -> 16, i8 -> 32.
    pack = max(8, 32 // max(1, min(logit_isz, feat_isz)))

    # VMEM bytes per block row per grid step:
    #   * double-buffered logits / features input blocks
    #   * the (block_n, 1) int32 target block lane-pads to (block_n, 128) per buffer
    #   * ~4 f32 (block_n, C) live intermediates (shifted, exp, iota/mask, select)
    #   * one f32 (block_n, F) intermediate (|features| before the row reduce)
    per_row = (2 * (c * logit_isz + f * feat_isz)
               + 2 * 128 * 4
               + 4 * c * 4
               + f * 4)

    bn = budget // per_row
    # Keep >= ~4 grid steps when N allows it, so v7x's two TensorCores each get
    # work and BlockSpec double-buffering has something to overlap.
    if n >= 4 * pack:
        bn = min(bn, _round_up(-(-n // 4), pack))
    bn = max(pack, _round_down(bn, pack))
    if bn >= n:
        return n, int(vmem_limit)          # single block == full (ragged-free) dim
    return int(bn), int(vmem_limit)


def ib_loss_forward(logits, target, features, *, block_n=None):
    """logits (N, C) float, target (N,) int, features (N, F) float -> scalar f32."""
    n, c = logits.shape
    f = features.shape[1]
    target2d = target.reshape(n, 1).astype(jnp.int32)

    logit_isz = jnp.dtype(logits.dtype).itemsize
    feat_isz = jnp.dtype(features.dtype).itemsize
    auto_bn, vmem_limit = _choose_block_n(n, c, f, logit_isz, feat_isz)
    if block_n is None:
        block_n = auto_bn
    block_n = min(block_n, n)
    num_tiles = -(-n // block_n)

    kernel = functools.partial(_ib_loss_kernel, n_total=n, block_n=block_n)

    partials = pl.pallas_call(
        kernel,
        out_shape=jax.ShapeDtypeStruct((num_tiles, 8, 128), jnp.float32),
        grid=(num_tiles,),
        in_specs=[
            pl.BlockSpec((block_n, c), lambda i: (i, 0)),
            pl.BlockSpec((block_n, 1), lambda i: (i, 0)),
            pl.BlockSpec((block_n, f), lambda i: (i, 0)),
        ],
        out_specs=pl.BlockSpec((1, 8, 128), lambda i: (i, 0, 0)),
        compiler_params=pltpu.CompilerParams(
            dimension_semantics=("parallel",),
            vmem_limit_bytes=vmem_limit,
        ),
    )(logits, target2d, features)

    return jnp.sum(partials[:, 0, 0]) / jnp.float32(n)


def _ib_loss_reference(logits, target, features):
    c = logits.shape[1]
    sm = jax.nn.softmax(logits.astype(jnp.float32), axis=1)
    oh = jax.nn.one_hot(target, c, dtype=jnp.float32)
    grads = jnp.sum(jnp.abs(sm - oh), axis=1)
    feat = jnp.sum(jnp.abs(features.astype(jnp.float32)), axis=1)
    ib = ALPHA / (grads * feat + EPSILON)
    ce = -jnp.sum(oh * jax.nn.log_softmax(logits.astype(jnp.float32), axis=1), axis=1)
    return jnp.mean(ce * ib)


if __name__ == "__main__":
    key = jax.random.PRNGKey(0)
    k1, k2, k3, k4, k5, k6 = jax.random.split(key, 6)

    # Case 1: small problem, single tile (block_n == N).
    N1, C1, F1 = 16, 32, 64
    logits1 = jax.random.normal(k1, (N1, C1), dtype=jnp.float32)
    target1 = jax.random.randint(k2, (N1,), 0, C1, dtype=jnp.int32)
    feats1 = jax.random.normal(k3, (N1, F1), dtype=jnp.float32)
    loss1 = ib_loss_forward(logits1, target1, feats1)
    jax.block_until_ready(loss1)
    ref1 = _ib_loss_reference(logits1, target1, feats1)
    assert jnp.allclose(loss1, ref1, rtol=2e-3, atol=1e-3), (loss1, ref1)

    # Case 2: multi-tile grid with a ragged (masked) last tile.
    N2, C2, F2 = 20, 37, 50
    logits2 = jax.random.normal(k4, (N2, C2), dtype=jnp.float32)
    target2 = jax.random.randint(k5, (N2,), 0, C2, dtype=jnp.int32)
    feats2 = jax.random.normal(k6, (N2, F2), dtype=jnp.float32)
    loss2 = ib_loss_forward(logits2, target2, feats2, block_n=8)
    jax.block_until_ready(loss2)
    ref2 = _ib_loss_reference(logits2, target2, feats2)
    assert jnp.allclose(loss2, ref2, rtol=2e-3, atol=1e-3), (loss2, ref2)

    print("KERNEL_OK")
</pallas_src>

<mosaic_0001>
module attributes {stable_mosaic.version = 11 : i64} {
  func.func @_ib_loss_kernel(%arg0: i32, %arg1: memref<16x32xf32, #tpu.memory_space<vmem>>, %arg2: memref<16x1xi32, #tpu.memory_space<vmem>>, %arg3: memref<16x64xf32, #tpu.memory_space<vmem>>, %arg4: memref<1x8x128xf32, #tpu.memory_space<vmem>>) attributes {dimension_semantics = [#tpu.dimension_semantics<parallel>], iteration_bounds = array<i64: 1>, scalar_prefetch = 0 : i64, scratch_operands = 0 : i64, tpu.core_type = #tpu.core_type<tc>, window_params = [{transform_indices = @transform_0, window_bounds = array<i64: 16, 32>}, {transform_indices = @transform_1, window_bounds = array<i64: 16, 1>}, {transform_indices = @transform_2, window_bounds = array<i64: 16, 64>}, {transform_indices = @transform_3, window_bounds = array<i64: 1, 8, 128>}]} {
    %c0 = arith.constant 0 : index
    %c0_0 = arith.constant 0 : index
    %0 = vector.load %arg1[%c0, %c0_0] : memref<16x32xf32, #tpu.memory_space<vmem>>, vector<16x32xf32>
    %c0_1 = arith.constant 0 : index
    %c0_2 = arith.constant 0 : index
    %1 = vector.load %arg2[%c0_1, %c0_2] : memref<16x1xi32, #tpu.memory_space<vmem>>, vector<16x1xi32>
    %c0_3 = arith.constant 0 : index
    %c0_4 = arith.constant 0 : index
    %2 = vector.load %arg3[%c0_3, %c0_4] : memref<16x64xf32, #tpu.memory_space<vmem>>, vector<16x64xf32>
    %3 = tpu.iota {dimensions = array<i32: 1>} : vector<16x32xi32>
    %4 = vector.broadcast %1 : vector<16x1xi32> to vector<16x32xi32>
    %5 = arith.cmpi eq, %3, %4 : vector<16x32xi32>
    %cst = arith.constant 0.000000e+00 : f32
    %6 = vector.broadcast %cst : f32 to vector<16x32xf32>
    %7 = arith.select %5, %0, %6 : vector<16x32xi1>, vector<16x32xf32>
    %cst_5 = arith.constant dense<0.000000e+00> : vector<16xf32>
    %8 = vector.multi_reduction <add>, %7, %cst_5 [1] : vector<16x32xf32> to vector<16xf32>
    %9 = vector.shape_cast %8 : vector<16xf32> to vector<16x1xf32>
    %cst_6 = arith.constant dense<0xFF800000> : vector<16xf32>
    %10 = vector.multi_reduction <maximumf>, %0, %cst_6 [1] : vector<16x32xf32> to vector<16xf32>
    %11 = vector.shape_cast %10 : vector<16xf32> to vector<16x1xf32>
    %12 = vector.broadcast %11 : vector<16x1xf32> to vector<16x32xf32>
    %13 = arith.subf %0, %12 : vector<16x32xf32>
    %14 = math.exp %13 : vector<16x32xf32>
    %cst_7 = arith.constant dense<0.000000e+00> : vector<16xf32>
    %15 = vector.multi_reduction <add>, %14, %cst_7 [1] : vector<16x32xf32> to vector<16xf32>
    %16 = vector.shape_cast %15 : vector<16xf32> to vector<16x1xf32>
    %17 = math.log %16 : vector<16x1xf32>
    %18 = arith.addf %11, %17 : vector<16x1xf32>
    %19 = arith.subf %18, %9 : vector<16x1xf32>
    %cst_8 = arith.constant 0.000000e+00 : f32
    %20 = vector.broadcast %cst_8 : f32 to vector<16x1xf32>
    %21 = arith.subf %20, %19 : vector<16x1xf32>
    %22 = math.exp %21 : vector<16x1xf32>
    %cst_9 = arith.constant 1.000000e+00 : f32
    %23 = vector.broadcast %cst_9 : f32 to vector<16x1xf32>
    %24 = arith.subf %23, %22 : vector<16x1xf32>
    %cst_10 = arith.constant 2.000000e+00 : f32
    %25 = vector.broadcast %cst_10 : f32 to vector<16x1xf32>
    %26 = arith.mulf %25, %24 : vector<16x1xf32>
    %27 = math.absf %2 : vector<16x64xf32>
    %cst_11 = arith.constant dense<0.000000e+00> : vector<16xf32>
    %28 = vector.multi_reduction <add>, %27, %cst_11 [1] : vector<16x64xf32> to vector<16xf32>
    %29 = vector.shape_cast %28 : vector<16xf32> to vector<16x1xf32>
    %30 = arith.mulf %26, %29 : vector<16x1xf32>
    %cst_12 = arith.constant 1.000000e-03 : f32
    %31 = vector.broadcast %cst_12 : f32 to vector<16x1xf32>
    %32 = arith.addf %30, %31 : vector<16x1xf32>
    %cst_13 = arith.constant 1.000000e+04 : f32
    %33 = vector.broadcast %cst_13 : f32 to vector<16x1xf32>
    %34 = arith.divf %33, %32 : vector<16x1xf32>
    %c16_i32 = arith.constant 16 : i32
    %35 = arith.muli %arg0, %c16_i32 : i32
    %36 = tpu.iota {dimensions = array<i32: 0>} : vector<16x1xi32>
    %37 = vector.broadcast %35 : i32 to vector<16x1xi32>
    %38 = arith.addi %37, %36 : vector<16x1xi32>
    %c16_i32_14 = arith.constant 16 : i32
    %39 = vector.broadcast %c16_i32_14 : i32 to vector<16x1xi32>
    %40 = arith.cmpi slt, %38, %39 : vector<16x1xi32>
    %41 = arith.mulf %19, %34 : vector<16x1xf32>
    %cst_15 = arith.constant 0.000000e+00 : f32
    %42 = vector.broadcast %cst_15 : f32 to vector<16x1xf32>
    %43 = arith.select %40, %41, %42 : vector<16x1xi1>, vector<16x1xf32>
    %44 = vector.shape_cast %43 : vector<16x1xf32> to vector<1x16x1xf32>
    %cst_16 = arith.constant dense<0.000000e+00> : vector<1xf32>
    %45 = vector.multi_reduction <add>, %44, %cst_16 [1, 2] : vector<1x16x1xf32> to vector<1xf32>
    %46 = vector.shape_cast %45 : vector<1xf32> to vector<1x1x1xf32>
    %47 = vector.extract %46[0, 0, 0] : f32 from vector<1x1x1xf32>
    %48 = vector.broadcast %47 : f32 to vector<1x8x128xf32>
    %c0_17 = arith.constant 0 : index
    %c0_18 = arith.constant 0 : index
    %c0_19 = arith.constant 0 : index
    %49 = vector.load %arg4[%c0_17, %c0_18, %c0_19] : memref<1x8x128xf32, #tpu.memory_space<vmem>>, vector<1x8x128xf32>
    tpu.vector_store %arg4[%c0_17, %c0_18, %c0_19], %48 {strides = array<i32>} : memref<1x8x128xf32, #tpu.memory_space<vmem>>, vector<1x8x128xf32>,
    return
  }
  func.func @transform_0(%arg0: i32) -> (i32, i32) {
    %c0_i32 = arith.constant 0 : i32
    %c0_i32_0 = arith.constant 0 : i32
    return %arg0, %c0_i32 : i32, i32
  }
  func.func @transform_1(%arg0: i32) -> (i32, i32) {
    %c0_i32 = arith.constant 0 : i32
    %c0_i32_0 = arith.constant 0 : i32
    return %arg0, %c0_i32 : i32, i32
  }
  func.func @transform_2(%arg0: i32) -> (i32, i32) {
    %c0_i32 = arith.constant 0 : i32
    %c0_i32_0 = arith.constant 0 : i32
    return %arg0, %c0_i32 : i32, i32
  }
  func.func @transform_3(%arg0: i32) -> (i32, i32, i32) {
    %c0_i32 = arith.constant 0 : i32
    %c0_i32_0 = arith.constant 0 : i32
    %c0_i32_1 = arith.constant 0 : i32
    return %arg0, %c0_i32, %c0_i32_0 : i32, i32, i32
  }
}

</mosaic_0001>

<llo_original>
// kernel: tpu_custom_call.1
$region0: #{tpu_custom_call.1}
  #allocation0 [shape = 'u32[]', space=smem, size = 0x4, offset = 0x4, fixed_abs, tag = 'smem constant byte address 0x4 - core index']
  #allocation1 [shape = 'u32[144,128]{1,0:T(1,128)}', space=vmem, size = 0x12000, scoped, tag = 'internal scratch']
  %s0 = inlined_call_operand.vmem [shape: f32[16,32], index: 0, kind: input, shape index: {}]
  %s1 = inlined_call_operand.vmem [shape: s32[16,1], index: 1, kind: input, shape index: {}]
  %s2 = inlined_call_operand.hbm [shape: f32[16,64], index: 2, kind: input, shape index: {}]
  %s3 = inlined_call_operand.hbm [shape: f32[1,8,128], index: 3, kind: output, shape index: {}]
  %s4 = sld [smem:[#allocation0]]
  $region26: #{tpu_custom_call.1} parent=0
    _
  %s6 = ssub.s32 1, %s4
  %s7 = scalar_select 0, %s6, %s4
  $region1: #{tpu_custom_call.1} parent=0
    #allocation2 [shape = 'u8[8192]{0}', space=vmem, size = 0x2000, scoped, tag = 'input window, operand 2, single buffered']
    #allocation3 [shape = 's32[1]{0}', space=sflag, size = 0x4, scoped, tag = 'scoped memory for tpu_custom_call.1']
    #allocation4 [shape = 's32[1]{0}', space=sflag, size = 0x4, scoped, tag = 'scoped memory for tpu_custom_call.1']
    #allocation5 [shape = 'u8[4096]{0}', space=vmem, size = 0x1000, scoped, tag = 'output window, operand 0, single buffered']
    %8 = vsyncpa [#allocation3], 0
    %9 = vsyncpa [#allocation4], 0
    // Predicated region
    $region2: #{tpu_custom_call.1} parent=1 // pred_check
      _
    $region3: #{tpu_custom_call.1} parent=1 // pred_check_branch
      %11 = sbr.rel (0) target = $region5
    $region4: #{tpu_custom_call.1} parent=1 // pred_region
      _
    $region5: #{tpu_custom_call.1} parent=1 // pred_fallthru
      _
    // Predicated region
    $region6: #{tpu_custom_call.1} parent=1 // pred_check
      _
    $region7: #{tpu_custom_call.1} parent=1 // pred_check_branch
      %13 = sbr.rel (0) target = $region9
    $region8: #{tpu_custom_call.1} parent=1 // pred_region
      _
    $region9: #{tpu_custom_call.1} parent=1 // pred_fallthru
      _
    // Predicated region
    $region10: #{tpu_custom_call.1} parent=1 // pred_check
      _
    $region11: #{tpu_custom_call.1} parent=1 // pred_check_branch
      %15 = sbr.rel (0) target = $region13
    $region12: #{tpu_custom_call.1} parent=1 // pred_region
      %s17 = ssub.s32 256, 256
      %18 = vsyncadd [#allocation3], %s17
      %s19 = sshll.u32 [#allocation2], 4
      %s20 = int_to_ptr.vmem [resolvable:$true] %s19
      %25 = dma.hbm_to_vmem [thread:$0]  %s2, 256, %s20, [#allocation3], 128, 128, 8
    $region13: #{tpu_custom_call.1} parent=1 // pred_fallthru
      _
    // Predicated region
    $region14: #{tpu_custom_call.1} parent=1 // pred_check
      _
    $region15: #{tpu_custom_call.1} parent=1 // pred_check_branch
      %27 = sbr.rel (0) target = $region17
    $region16: #{tpu_custom_call.1} parent=1 // pred_region
      %28 = dma.done [#allocation3], 256
    $region17: #{tpu_custom_call.1} parent=1 // pred_fallthru
      _
    %v29 = vld [vmem:[%s0] sm:$0xff]
    %v30 = vld [vmem:[%s0 + $0x8] sm:$0xff]
    %v31 = vld [vmem:[%s1] sm:$0xff]
    %v32 = vld [vmem:[%s1 + $0x8] sm:$0xff]
    %v33 = vld [vmem:[#allocation2] sm:$0xff]
    %v34 = vld [vmem:[#allocation2 + $0x8] sm:$0xff]
    %v35 = vlaneseq
    %v36 = vand.u32 %v35, 127
    %37 = vset.pattern.permute.xlu0 0
    %38 = vperm.xlu0 %37, %v31
    %v39 = vpop.permute.xlu0 %38
    %40 = vset.pattern.permute.xlu0 0
    %41 = vperm.xlu0 %40, %v32
    %v42 = vpop.permute.xlu0 %41
    %vm43 = vcmp.eq.s32.totalorder %v36, %v39
    %vm44 = vcmp.eq.s32.totalorder %v36, %v42
    %v45 = vsel %vm43, %v29, 0.0
    %v46 = vsel %vm44, %v30, 0.0
    %vm47 = vcmask 261120
    %v48 = vsel %vm47, %v45, 0.0
    %49 = vadd.xlane.f32.xlu0 %v48
    %v50 = vpop.xlane.xlu0 %49
    %v51 = vsel %vm47, %v46, 0.0
    %52 = vadd.xlane.f32.xlu0 %v51
    %v53 = vpop.xlane.xlu0 %52
    %v54 = vsel %vm47, %v29, -inf
    %55 = vmax.xlane.f32.xlu0 %v54
    %v56 = vpop.xlane.xlu0 %55
    %v57 = vsel %vm47, %v30, -inf
    %58 = vmax.xlane.f32.xlu0 %v57
    %v59 = vpop.xlane.xlu0 %58
    %v60 = vsub.f32 %v29, %v56
    %v61 = vsub.f32 %v30, %v59
    %v62 = vmul.f32 %v60, 1.442695
    %v63 = vpow.pop %v62
    %v64 = vmul.f32 %v61, 1.442695
    %v65 = vpow.pop %v64
    %v66 = vsel %vm47, %v63, 0.0
    %67 = vadd.xlane.f32.xlu0 %v66
    %v68 = vpop.xlane.xlu0 %67
    %v69 = vsel %vm47, %v65, 0.0
    %70 = vadd.xlane.f32.xlu0 %v69
    %v71 = vpop.xlane.xlu0 %70
    %v72 = vlog2.pop %v68
    %v73 = vmul.f32 %v72, 0.6931472
    %v74 = vlog2.pop %v71
    %v75 = vmul.f32 %v74, 0.6931472
    %v76 = vadd.f32 %v56, %v73
    %v77 = vadd.f32 %v59, %v75
    %v78 = vsub.f32 %v76, %v50
    %v79 = vsub.f32 %v77, %v53
    %v80 = vsub.f32 0.0, %v78
    %v81 = vsub.f32 0.0, %v79
    %v82 = vmul.f32 %v80, 1.442695
    %v83 = vpow.pop %v82
    %v84 = vmul.f32 %v81, 1.442695
    %v85 = vpow.pop %v84
    %v86 = vsub.f32 1.0, %v83
    %v87 = vsub.f32 1.0, %v85
    %v88 = vmul.f32 %v86, 2.0
    %v89 = vmul.f32 %v87, 2.0
    %v90 = vand.u32 2147483647, %v33
    %v91 = vand.u32 2147483647, %v34
    %vm92 = vcmask 523264
    %v93 = vsel %vm92, %v90, 0.0
    %94 = vadd.xlane.f32.xlu0 %v93
    %v95 = vpop.xlane.xlu0 %94
    %v96 = vsel %vm92, %v91, 0.0
    %97 = vadd.xlane.f32.xlu0 %v96
    %v98 = vpop.xlane.xlu0 %97
    %v99 = vmul.f32 %v88, %v95
    %v100 = vmul.f32 %v89, %v98
    %v101 = vadd.f32 %v99, 0.001
    %v102 = vadd.f32 %v100, 0.001
    %v103 = vrcp.pop %v101
    %v104 = vmul.f32 10000.0, %v103
    %v105 = vrcp.pop %v102
    %v106 = vmul.f32 10000.0, %v105
    %s107 = smul.u32 0, 16
    %v108 = vlaneseq
    %v109 = vshrl.u32 %v108, 7
    %v110 = vadd.s32 %v109, 8
    %v111 = vstv %s107
    %v112 = vadd.s32 %v111, %v109
    %v113 = vadd.s32 %v111, %v110
    %vm114 = vcmp.lt.s32.totalorder %v112, 16
    %vm115 = vcmp.lt.s32.totalorder %v113, 16
    %v116 = vmul.f32 %v78, %v104
    %v117 = vmul.f32 %v79, %v106
    %v118 = vsel %vm114, %v116, 0.0
    %v119 = vsel %vm115, %v117, 0.0
    %vm120 = vcmask 7168
    %v121 = vsel %vm120, %v118, 0.0
    %v122 = vsel %vm120, %v119, 0.0
    %v123 = vadd.f32 %v121, %v122
    %124 = vadd.xlane.f32.xlu0 %v123
    %v125 = vpop.xlane.xlu0 %124
    %v126 = vrot.slane %v125, 4
    %v127 = vadd.f32 %v125, %v126
    %v128 = vrot.slane %v127, 2
    %v129 = vadd.f32 %v127, %v128
    %v130 = vrot.slane %v129, 1
    %v131 = vadd.f32 %v129, %v130
    %s132 = vtos %v131
    %v133 = vstv %s132
    %134 = vst [vmem:[#allocation5] sm:$0xff] %v133
    // Predicated region
    $region18: #{tpu_custom_call.1} parent=1 // pred_check
      _
    $region19: #{tpu_custom_call.1} parent=1 // pred_check_branch
      %136 = sbr.rel (0) target = $region21
    $region20: #{tpu_custom_call.1} parent=1 // pred_region
      %s138 = ssub.s32 128, 128
      %139 = vsyncadd [#allocation4], %s138
      %s141 = sshll.u32 [#allocation5], 4
      %s142 = int_to_ptr.vmem [resolvable:$true] %s141
      %144 = dma.vmem_to_hbm [thread:$0]  %s142, 128, %s3, [#allocation4]
    $region21: #{tpu_custom_call.1} parent=1 // pred_fallthru
      _
    // Predicated region
    $region22: #{tpu_custom_call.1} parent=1 // pred_check
      _
    $region23: #{tpu_custom_call.1} parent=1 // pred_check_branch
      %146 = sbr.rel (0) target = $region25
    $region24: #{tpu_custom_call.1} parent=1 // pred_region
      %147 = dma.done [#allocation4], 128
    $region25: #{tpu_custom_call.1} parent=1 // pred_fallthru
      _
    %148 = vsyncpa [#allocation3], 1
    %149 = vsyncpa [#allocation4], 1

</llo_original>
